<compile_context>
chip_gen: v7x
topology: tpu7x:2x2x1
jax: 0.10.0
libtpu: 0.0.40
codegen_flags: <defaults>
</compile_context>

<pallas_src>
import functools

import jax
import jax.numpy as jnp
from jax import lax
from jax.experimental import pallas as pl
from jax.experimental.pallas import tpu as pltpu

# ------------------------- configuration (deterministic) ---------------------
LOSS_WEIGHTS = (0.5, 0.3, 0.2)        # MSE, L1, SmoothL1
HUBER_BETA = 1.0                      # PyTorch SmoothL1Loss default beta

LANES = 128
CHUNK_M = 512                         # rows per inner compute chunk (256 KiB f32)
TILE_BYTES_PER_INPUT = 4 * 1024 * 1024  # DMA tile byte budget per input
VMEM_LIMIT_BYTES = 40 << 20           # 2 in x 2 buf x 4 MiB + intermediates, w/ headroom


def _num_tensorcores():
    """2 on megacore chips (v4/v5p) and v7x; 1 on v5e/v6e (and as safe default)."""
    try:
        kind = jax.devices()[0].device_kind.lower()
    except Exception:  # pragma: no cover - defensive
        return 1
    if "lite" in kind or "v5e" in kind or "v6e" in kind:
        return 1
    for tag in ("v4", "v5p", "7"):
        if tag in kind:
            return 2
    return 1


def _fused_weighted_loss(x, t, coeffs, beta):
    """Per-element  w0*mse + w1*l1 + w2*smooth_l1  with weights pre-folded."""
    c0, c1, c2a, c2b, c2c = coeffs
    d = x - t
    ad = jnp.abs(d)
    sq = d * d
    # w2 * huber == where(ad < beta, (0.5*w2/beta)*sq, w2*ad - 0.5*w2*beta)
    return c0 * sq + c1 * ad + jnp.where(ad < beta, c2a * sq, c2b * ad - c2c)


def _combined_loss_kernel(x_ref, t_ref, out_ref, *, coeffs, beta, tile_m, chunk_m,
                          tiles_per_core, m_rows, needs_mask):
    c = pl.program_id(0)   # core-split axis ("parallel")
    i = pl.program_id(1)   # reduction axis ("arbitrary")

    @pl.when(i == 0)
    def _init():
        out_ref[...] = jnp.zeros_like(out_ref)

    n_chunks = tile_m // chunk_m
    unroll = n_chunks if n_chunks <= 8 else 1

    def chunk_partial(s, masked, tile_row0):
        r0 = pl.multiple_of(s * chunk_m, chunk_m)
        xv = x_ref[pl.ds(r0, chunk_m), :].astype(jnp.float32)
        tv = t_ref[pl.ds(r0, chunk_m), :].astype(jnp.float32)
        val = _fused_weighted_loss(xv, tv, coeffs, beta)
        if masked:
            # Zero rows past the end of the array (ragged last tile, or a clamped
            # out-of-range tile on the second core -> entirely zeroed).
            row = lax.broadcasted_iota(jnp.int32, (chunk_m, LANES), 0)
            global_row = tile_row0 + s * chunk_m + row
            val = jnp.where(global_row < m_rows, val, 0.0)
        # (chunk,128)->(chunk/8,8,128)->sum(axis=0): native-tile grouping, pure VPU.
        return val.reshape(chunk_m // 8, 8, LANES).sum(axis=0)

    def accumulate(masked):
        tile_row0 = (c * tiles_per_core + i) * tile_m if masked else 0

        def body(s, acc):
            return acc + chunk_partial(s, masked, tile_row0)

        acc = lax.fori_loop(0, n_chunks, body,
                            jnp.zeros((8, LANES), jnp.float32), unroll=unroll)
        out_ref[...] += acc

    if needs_mask:
        # Only the ragged / overflow tile runs the masked path; full tiles are clean.
        is_full = (c * tiles_per_core + i + 1) * tile_m <= m_rows

        @pl.when(is_full)
        def _full():
            accumulate(False)

        @pl.when(jnp.logical_not(is_full))
        def _masked():
            accumulate(True)
    else:
        accumulate(False)


def combined_loss(inputs, targets, weights=LOSS_WEIGHTS, beta=HUBER_BETA):
    """inputs/targets: same shape, any float dtype. Returns the scalar combined loss."""
    assert inputs.shape == targets.shape
    n = int(inputs.size)
    beta = float(beta)
    w0, w1, w2 = (float(w) for w in weights)
    coeffs = (w0, w1, w2 * 0.5 / beta, w2, w2 * 0.5 * beta)

    flat_x = inputs.reshape(-1)
    flat_t = targets.reshape(-1)

    m_rows = n // LANES
    tail = n - m_rows * LANES

    def plain_sum(xv, tv):
        return jnp.sum(_fused_weighted_loss(xv.astype(jnp.float32),
                                            tv.astype(jnp.float32), coeffs, beta))

    # <=127-element ragged tail handled in plain JAX (no O(N) pad copy).
    tail_sum = plain_sum(flat_x[m_rows * LANES:], flat_t[m_rows * LANES:]) if tail else 0.0

    if m_rows < 8:
        # Too small for a sublane-aligned tile; do everything in plain JAX.
        main_sum = plain_sum(flat_x[:m_rows * LANES], flat_t[:m_rows * LANES]) if m_rows else 0.0
        return (main_sum + tail_sum) * (1.0 / n)

    # Lane-aligned main body. When N is already a multiple of 128 this is a free
    # reshape (no copy); otherwise only the aligned prefix feeds the kernel.
    x_main = flat_x if tail == 0 else flat_x[:m_rows * LANES]
    t_main = flat_t if tail == 0 else flat_t[:m_rows * LANES]
    x2d = x_main.reshape(m_rows, LANES)
    t2d = t_main.reshape(m_rows, LANES)

    # Dtype-aware, byte-budget tile sizing (constant DMA bytes per grid step).
    itemsize = max(jnp.dtype(inputs.dtype).itemsize, jnp.dtype(targets.dtype).itemsize)
    budget_rows = max(CHUNK_M, TILE_BYTES_PER_INPUT // (LANES * itemsize))
    tile_m = min(budget_rows, m_rows)
    if tile_m >= CHUNK_M:
        tile_m = (tile_m // CHUNK_M) * CHUNK_M
        chunk_m = CHUNK_M
    else:
        tile_m = (tile_m // 8) * 8
        chunk_m = tile_m

    num_tiles = pl.cdiv(m_rows, tile_m)
    ncores = min(_num_tensorcores(), num_tiles)
    tiles_per_core = pl.cdiv(num_tiles, ncores)
    # Any logical tile that reaches past m_rows (ragged tail or second-core overflow)
    # must be masked in-kernel.
    needs_mask = ncores * tiles_per_core * tile_m > m_rows

    def row_block(c, i):
        # Clamp to a valid block index; overflow tiles are fully masked in-kernel.
        return jnp.minimum(c * tiles_per_core + i, num_tiles - 1)

    in_spec = pl.BlockSpec((tile_m, LANES), lambda c, i: (row_block(c, i), 0))

    kernel = functools.partial(
        _combined_loss_kernel,
        coeffs=coeffs, beta=beta, tile_m=tile_m, chunk_m=chunk_m,
        tiles_per_core=tiles_per_core, m_rows=m_rows, needs_mask=needs_mask,
    )

    cost = pl.CostEstimate(
        flops=13 * m_rows * LANES,
        transcendentals=0,
        bytes_accessed=2 * m_rows * LANES * int(itemsize) + ncores * 8 * LANES * 4,
    )

    partials = pl.pallas_call(
        kernel,
        out_shape=jax.ShapeDtypeStruct((ncores * 8, LANES), jnp.float32),
        grid_spec=pltpu.PrefetchScalarGridSpec(
            num_scalar_prefetch=0,
            grid=(ncores, tiles_per_core),
            in_specs=[in_spec, in_spec],
            out_specs=pl.BlockSpec((8, LANES), lambda c, i: (c, 0)),
        ),
        compiler_params=pltpu.CompilerParams(
            dimension_semantics=("parallel", "arbitrary"),
            vmem_limit_bytes=VMEM_LIMIT_BYTES,
        ),
        cost_estimate=cost,
    )(x2d, t2d)

    # Weights already folded per element; a single mean finishes all three losses.
    return (jnp.sum(partials) + tail_sum) * (1.0 / n)


def _reference_combined_loss(inputs, targets, weights=LOSS_WEIGHTS, beta=HUBER_BETA):
    x = inputs.astype(jnp.float32)
    t = targets.astype(jnp.float32)
    diff = x - t
    adiff = jnp.abs(diff)
    mse = jnp.mean(diff * diff)
    l1 = jnp.mean(adiff)
    huber = jnp.mean(jnp.where(adiff < beta, 0.5 * diff * diff / beta, adiff - 0.5 * beta))
    return weights[0] * mse + weights[1] * l1 + weights[2] * huber


if __name__ == "__main__":
    key = jax.random.PRNGKey(0)
    k1, k2 = jax.random.split(key)
    # Small NCHW regression tensors.
    inputs = jax.random.normal(k1, (2, 4, 16, 16), dtype=jnp.float32)
    targets = jax.random.normal(k2, (2, 4, 16, 16), dtype=jnp.float32)

    loss = jax.block_until_ready(combined_loss(inputs, targets))
    ref = jax.block_until_ready(_reference_combined_loss(inputs, targets))
    assert jnp.allclose(loss, ref, rtol=1e-5, atol=1e-5), (loss, ref)
    print("KERNEL_OK")
</pallas_src>

<mosaic_0001>
module attributes {stable_mosaic.version = 11 : i64} {
  func.func @_combined_loss_kernel(%arg0: i32, %arg1: i32, %arg2: memref<16x128xf32, #tpu.memory_space<vmem>>, %arg3: memref<16x128xf32, #tpu.memory_space<vmem>>, %arg4: memref<8x128xf32, #tpu.memory_space<vmem>>) attributes {dimension_semantics = [#tpu.dimension_semantics<parallel>, #tpu.dimension_semantics<arbitrary>], iteration_bounds = array<i64: 1, 1>, scalar_prefetch = 0 : i64, scratch_operands = 0 : i64, tpu.core_type = #tpu.core_type<tc>, window_params = [{transform_indices = @transform_0, window_bounds = array<i64: 16, 128>}, {transform_indices = @transform_1, window_bounds = array<i64: 16, 128>}, {transform_indices = @transform_2, window_bounds = array<i64: 8, 128>}]} {
    %c0_i32 = arith.constant 0 : i32
    %0 = arith.cmpi eq, %arg1, %c0_i32 : i32
    %1 = arith.extui %0 : i1 to i32
    %c0_i32_0 = arith.constant 0 : i32
    %2 = arith.cmpi ne, %1, %c0_i32_0 : i32
    scf.if %2 {
      %cst_14 = arith.constant 0.000000e+00 : f32
      %34 = vector.broadcast %cst_14 : f32 to vector<8x128xf32>
      %c0_15 = arith.constant 0 : index
      %c0_16 = arith.constant 0 : index
      %35 = vector.load %arg4[%c0_15, %c0_16] : memref<8x128xf32, #tpu.memory_space<vmem>>, vector<8x128xf32>
      tpu.vector_store %arg4[%c0_15, %c0_16], %34 {strides = array<i32>} : memref<8x128xf32, #tpu.memory_space<vmem>>, vector<8x128xf32>,
    } else {
    }
    %cst = arith.constant 0.000000e+00 : f32
    %3 = vector.broadcast %cst : f32 to vector<8x128xf32>
    %c0_i32_1 = arith.constant 0 : i32
    %c16_i32 = arith.constant 16 : i32
    %4 = arith.muli %c0_i32_1, %c16_i32 : i32
    %5 = tpu.assume_multiple %4, 16 : i32
    %6 = arith.index_cast %5 : i32 to index
    %c0 = arith.constant 0 : index
    %7 = vector.load %arg2[%6, %c0] : memref<16x128xf32, #tpu.memory_space<vmem>>, vector<16x128xf32>
    %8 = arith.index_cast %5 : i32 to index
    %c0_2 = arith.constant 0 : index
    %9 = vector.load %arg3[%8, %c0_2] : memref<16x128xf32, #tpu.memory_space<vmem>>, vector<16x128xf32>
    %10 = arith.subf %7, %9 : vector<16x128xf32>
    %11 = math.absf %10 : vector<16x128xf32>
    %12 = arith.mulf %10, %10 : vector<16x128xf32>
    %cst_3 = arith.constant 5.000000e-01 : f32
    %13 = vector.broadcast %cst_3 : f32 to vector<16x128xf32>
    %14 = arith.mulf %13, %12 : vector<16x128xf32>
    %cst_4 = arith.constant 3.000000e-01 : f32
    %15 = vector.broadcast %cst_4 : f32 to vector<16x128xf32>
    %16 = arith.mulf %15, %11 : vector<16x128xf32>
    %17 = arith.addf %14, %16 : vector<16x128xf32>
    %cst_5 = arith.constant 1.000000e+00 : f32
    %18 = vector.broadcast %cst_5 : f32 to vector<16x128xf32>
    %19 = arith.cmpf olt, %11, %18 : vector<16x128xf32>
    %cst_6 = arith.constant 1.000000e-01 : f32
    %20 = vector.broadcast %cst_6 : f32 to vector<16x128xf32>
    %21 = arith.mulf %20, %12 : vector<16x128xf32>
    %cst_7 = arith.constant 2.000000e-01 : f32
    %22 = vector.broadcast %cst_7 : f32 to vector<16x128xf32>
    %23 = arith.mulf %22, %11 : vector<16x128xf32>
    %cst_8 = arith.constant 1.000000e-01 : f32
    %24 = vector.broadcast %cst_8 : f32 to vector<16x128xf32>
    %25 = arith.subf %23, %24 : vector<16x128xf32>
    %26 = arith.select %19, %21, %25 : vector<16x128xi1>, vector<16x128xf32>
    %27 = arith.addf %17, %26 : vector<16x128xf32>
    %28 = vector.shape_cast %27 : vector<16x128xf32> to vector<2x8x128xf32>
    %cst_9 = arith.constant dense<0.000000e+00> : vector<8x128xf32>
    %29 = vector.multi_reduction <add>, %28, %cst_9 [0] : vector<2x8x128xf32> to vector<8x128xf32>
    %30 = arith.addf %3, %29 : vector<8x128xf32>
    %c1_i32 = arith.constant 1 : i32
    %c0_10 = arith.constant 0 : index
    %c0_11 = arith.constant 0 : index
    %31 = vector.load %arg4[%c0_10, %c0_11] : memref<8x128xf32, #tpu.memory_space<vmem>>, vector<8x128xf32>
    %32 = arith.addf %31, %30 : vector<8x128xf32>
    %c0_12 = arith.constant 0 : index
    %c0_13 = arith.constant 0 : index
    %33 = vector.load %arg4[%c0_12, %c0_13] : memref<8x128xf32, #tpu.memory_space<vmem>>, vector<8x128xf32>
    tpu.vector_store %arg4[%c0_12, %c0_13], %32 {strides = array<i32>} : memref<8x128xf32, #tpu.memory_space<vmem>>, vector<8x128xf32>,
    return
  }
  func.func @transform_0(%arg0: i32, %arg1: i32) -> (i32, i32) {
    %c1_i32 = arith.constant 1 : i32
    %0 = arith.muli %arg0, %c1_i32 : i32
    %1 = arith.addi %0, %arg1 : i32
    %c0_i32 = arith.constant 0 : i32
    %2 = arith.minsi %1, %c0_i32 : i32
    %c0_i32_0 = arith.constant 0 : i32
    %c0_i32_1 = arith.constant 0 : i32
    return %2, %c0_i32_0 : i32, i32
  }
  func.func @transform_1(%arg0: i32, %arg1: i32) -> (i32, i32) {
    %c1_i32 = arith.constant 1 : i32
    %0 = arith.muli %arg0, %c1_i32 : i32
    %1 = arith.addi %0, %arg1 : i32
    %c0_i32 = arith.constant 0 : i32
    %2 = arith.minsi %1, %c0_i32 : i32
    %c0_i32_0 = arith.constant 0 : i32
    %c0_i32_1 = arith.constant 0 : i32
    return %2, %c0_i32_0 : i32, i32
  }
  func.func @transform_2(%arg0: i32, %arg1: i32) -> (i32, i32) {
    %c0_i32 = arith.constant 0 : i32
    %c0_i32_0 = arith.constant 0 : i32
    return %arg0, %c0_i32 : i32, i32
  }
}

</mosaic_0001>

<llo_original>
// kernel: tpu_custom_call.1
$region0: #{tpu_custom_call.1}
  #allocation0 [shape = 'u32[]', space=smem, size = 0x4, offset = 0x4, fixed_abs, tag = 'smem constant byte address 0x4 - core index']
  #allocation1 [shape = 'u32[144,128]{1,0:T(1,128)}', space=vmem, size = 0x12000, scoped, tag = 'internal scratch']
  %s0 = inlined_call_operand.hbm [shape: f32[16,128], index: 0, kind: input, shape index: {}]
  %s1 = inlined_call_operand.hbm [shape: f32[16,128], index: 1, kind: input, shape index: {}]
  %s2 = inlined_call_operand.hbm [shape: f32[8,128], index: 2, kind: output, shape index: {}]
  %s3 = sld [smem:[#allocation0]]
  $region30: #{tpu_custom_call.1} parent=0
    _
  %s5 = ssub.s32 1, %s3
  %s6 = scalar_select 0, %s5, %s3
  $region1: #{tpu_custom_call.1} parent=0
    #allocation2 [shape = 'u8[8192]{0}', space=vmem, size = 0x2000, scoped, tag = 'input window, operand 0, single buffered']
    #allocation3 [shape = 's32[1]{0}', space=sflag, size = 0x4, scoped, tag = 'scoped memory for tpu_custom_call.1']
    #allocation4 [shape = 's32[1]{0}', space=sflag, size = 0x4, scoped, tag = 'scoped memory for tpu_custom_call.1']
    #allocation5 [shape = 'u8[8192]{0}', space=vmem, size = 0x2000, scoped, tag = 'input window, operand 1, single buffered']
    #allocation6 [shape = 's32[1]{0}', space=sflag, size = 0x4, scoped, tag = 'scoped memory for tpu_custom_call.1']
    #allocation7 [shape = 'u8[4096]{0}', space=vmem, size = 0x1000, scoped, tag = 'output window, operand 0, single buffered']
    %7 = vsyncpa [#allocation3], 0
    %8 = vsyncpa [#allocation6], 0
    %9 = vsyncpa [#allocation4], 0
    // Predicated region
    $region2: #{tpu_custom_call.1} parent=1 // pred_check
      _
    $region3: #{tpu_custom_call.1} parent=1 // pred_check_branch
      %11 = sbr.rel (0) target = $region5
    $region4: #{tpu_custom_call.1} parent=1 // pred_region
      %s12 = sadd.s32 0, 0
      %p13 = scmp.lt.s32.totalorder %s12, 0
      %s14 = scalar_select %p13, %s12, 0
      %s15 = smul.u32 2, %s14
      %s17 = ssub.s32 256, 256
      %18 = vsyncadd [#allocation3], %s17
      %s19 = smul.addr %s15, 128
      %s20 = scalar_lea.hbm %s0, %s19
      %s21 = sshll.u32 [#allocation2], 4
      %s22 = int_to_ptr.vmem [resolvable:$true] %s21
      %27 = dma.hbm_to_vmem [thread:$0]  %s20, 256, %s22, [#allocation3], 128, 128, 8
    $region5: #{tpu_custom_call.1} parent=1 // pred_fallthru
      _
    // Predicated region
    $region6: #{tpu_custom_call.1} parent=1 // pred_check
      _
    $region7: #{tpu_custom_call.1} parent=1 // pred_check_branch
      %29 = sbr.rel (0) target = $region9
    $region8: #{tpu_custom_call.1} parent=1 // pred_region
      %s30 = sadd.s32 0, 0
      %p31 = scmp.lt.s32.totalorder %s30, 0
      %s32 = scalar_select %p31, %s30, 0
      %s33 = smul.u32 2, %s32
      %s35 = ssub.s32 256, 256
      %36 = vsyncadd [#allocation6], %s35
      %s37 = smul.addr %s33, 128
      %s38 = scalar_lea.hbm %s1, %s37
      %s39 = sshll.u32 [#allocation5], 4
      %s40 = int_to_ptr.vmem [resolvable:$true] %s39
      %45 = dma.hbm_to_vmem [thread:$0]  %s38, 256, %s40, [#allocation6], 128, 128, 8
    $region9: #{tpu_custom_call.1} parent=1 // pred_fallthru
      _
    // Predicated region
    $region10: #{tpu_custom_call.1} parent=1 // pred_check
      _
    $region11: #{tpu_custom_call.1} parent=1 // pred_check_branch
      %47 = sbr.rel (0) target = $region13
    $region12: #{tpu_custom_call.1} parent=1 // pred_region
      %48 = dma.done [#allocation3], 256
    $region13: #{tpu_custom_call.1} parent=1 // pred_fallthru
      _
    // Predicated region
    $region14: #{tpu_custom_call.1} parent=1 // pred_check
      _
    $region15: #{tpu_custom_call.1} parent=1 // pred_check_branch
      %50 = sbr.rel (0) target = $region17
    $region16: #{tpu_custom_call.1} parent=1 // pred_region
      %51 = dma.done [#allocation6], 256
    $region17: #{tpu_custom_call.1} parent=1 // pred_fallthru
      _
    %s52 = sadd.s32 0, 0
    %p53 = scmp.lt.s32.totalorder %s52, 0
    %s54 = scalar_select %p53, %s52, 0
    %s55 = smul.u32 2, %s54
    %s56 = sadd.s32 0, 0
    %p57 = scmp.lt.s32.totalorder %s56, 0
    %s58 = scalar_select %p57, %s56, 0
    %s59 = smul.u32 2, %s58
    %p60 = scmp.eq.s32.totalorder 0, 0
    // Predicated region
    $region18: #{tpu_custom_call.1} parent=1 // pred_check
      %p61 = pneg %p60
    $region19: #{tpu_custom_call.1} parent=1 // pred_check_branch
      %63 = sbr.rel (%p61) target = $region21
    $region20: #{tpu_custom_call.1} parent=1 // pred_region
      %64 = vst [vmem:[#allocation7] sm:$0xff] 0.0
    $region21: #{tpu_custom_call.1} parent=1 // pred_fallthru
      _
    %v65 = vld [vmem:[#allocation2] sm:$0xff]
    %v66 = vld [vmem:[#allocation2 + $0x8] sm:$0xff]
    %v67 = vld [vmem:[#allocation5] sm:$0xff]
    %v68 = vld [vmem:[#allocation5 + $0x8] sm:$0xff]
    %v69 = vsub.f32 %v65, %v67
    %v70 = vsub.f32 %v66, %v68
    %v71 = vand.u32 2147483647, %v69
    %v72 = vand.u32 2147483647, %v70
    %v73 = vmul.f32 %v69, %v69
    %v74 = vmul.f32 %v70, %v70
    %v75 = vmul.f32 %v73, 0.5
    %v76 = vmul.f32 %v74, 0.5
    %v77 = vmul.f32 %v71, 0.3
    %v78 = vmul.f32 %v72, 0.3
    %v79 = vadd.f32 %v75, %v77
    %v80 = vadd.f32 %v76, %v78
    %vm81 = vcmp.lt.f32.partialorder %v71, 1.0
    %vm82 = vcmp.lt.f32.partialorder %v72, 1.0
    %v83 = vmul.f32 %v73, 0.1
    %v84 = vmul.f32 %v74, 0.1
    %v85 = vmul.f32 %v71, 0.2
    %v86 = vmul.f32 %v72, 0.2
    %v87 = vsub.f32 %v85, 0.1
    %v88 = vsub.f32 %v86, 0.1
    %v89 = vsel %vm81, %v83, %v87
    %v90 = vsel %vm82, %v84, %v88
    %v91 = vadd.f32 %v79, %v89
    %v92 = vadd.f32 %v80, %v90
    %v93 = vadd.f32 %v91, %v92
    %v94 = vadd.f32 %v93, 0.0
    %v95 = vld [vmem:[#allocation7] sm:$0xff]
    %v96 = vadd.f32 %v95, %v94
    %97 = vst [vmem:[#allocation7] sm:$0xff] %v96
    // Predicated region
    $region22: #{tpu_custom_call.1} parent=1 // pred_check
      _
    $region23: #{tpu_custom_call.1} parent=1 // pred_check_branch
      %99 = sbr.rel (0) target = $region25
    $region24: #{tpu_custom_call.1} parent=1 // pred_region
      %s101 = ssub.s32 128, 128
      %102 = vsyncadd [#allocation4], %s101
      %s104 = sshll.u32 [#allocation7], 4
      %s105 = int_to_ptr.vmem [resolvable:$true] %s104
      %107 = dma.vmem_to_hbm [thread:$0]  %s105, 128, %s2, [#allocation4]
    $region25: #{tpu_custom_call.1} parent=1 // pred_fallthru
      _
    // Predicated region
    $region26: #{tpu_custom_call.1} parent=1 // pred_check
      _
    $region27: #{tpu_custom_call.1} parent=1 // pred_check_branch
      %109 = sbr.rel (0) target = $region29
    $region28: #{tpu_custom_call.1} parent=1 // pred_region
      %110 = dma.done [#allocation4], 128
    $region29: #{tpu_custom_call.1} parent=1 // pred_fallthru
      _
    %111 = vsyncpa [#allocation3], 1
    %112 = vsyncpa [#allocation6], 1
    %113 = vsyncpa [#allocation4], 1

</llo_original>
